<compile_context>
chip_gen: v6e
topology: v6e:2x2x1
jax: 0.10.0
libtpu: 0.0.40
codegen_flags: <defaults>
</compile_context>

<pallas_src>
import functools

import jax
import jax.numpy as jnp
from jax.experimental import pallas as pl
from jax.experimental.pallas import tpu as pltpu

_LANE = 128       # column width of the streamed 2-D view (one vreg lane row)
_ROW_ALIGN = 32   # block-row multiple satisfying f32(8)/bf16(16)/int8(32) sublane tiling


def _round_up(v, m):
    return ((v + m - 1) // m) * m


def _cdiv(a, b):
    return -(-a // b)


def _pow_gamma(u, gamma):
    if gamma == 1.5:
        return u * jnp.sqrt(u)          # u**1.5 without pow (no extra exp/log on EUP)
    if gamma == 2.0:
        return u * u
    if gamma == 1.0:
        return u
    if gamma == 0.5:
        return jnp.sqrt(u)
    return jnp.power(u, jnp.float32(gamma))


def _focal_loss_kernel(x_ref, t_ref, out_ref, *, alpha, gamma, hard_targets,
                       approx_recip, block_rows, n_full_rows, rem, needs_mask):
    # Stream operands in native dtype; all math in f32.
    x = x_ref[...].astype(jnp.float32)
    t = t_ref[...].astype(jnp.float32)

    if hard_targets:
        # Valid for t in {0,1}:  z = (1-2t)*x,  bce = softplus(z),  1-p_t = sigmoid(z)
        z = x - (2.0 * t) * x
        e = jnp.exp(-jnp.abs(z))                         # shared by bce & sigmoid
        bce = jnp.maximum(z, 0.0) + jnp.log1p(e)
        r = pl.reciprocal(1.0 + e, approx=approx_recip)
        u = jnp.where(z >= 0.0, r, 1.0 - r)              # = 1 - p_t
    else:
        # General (soft-target-safe) formulation, matches BCEWithLogitsLoss exactly.
        e = jnp.exp(-jnp.abs(x))
        bce = jnp.maximum(x, 0.0) - x * t + jnp.log1p(e)
        r = pl.reciprocal(1.0 + e, approx=approx_recip)
        p = jnp.where(x >= 0.0, r, 1.0 - r)              # sigmoid(x)
        u = t + p - 2.0 * t * p                          # 1 - p_t
    u = jnp.maximum(u, 0.0)                              # guard sqrt vs approx-recip noise
    loss = (alpha * bce) * _pow_gamma(u, gamma)          # (block_rows, 128) f32

    def vreg_partials(vals):
        # Per-(sublane,lane) partial sums: pure VPU adds over the leading axis,
        # no in-kernel cross-lane (XLU) reduce; wrapper finishes the reduction.
        return jnp.sum(vals.reshape(-1, 8, _LANE), axis=0, keepdims=True)

    if not needs_mask:
        out_ref[...] = vreg_partials(loss)
    else:
        i = pl.program_id(0)
        last = pl.num_programs(0) - 1

        @pl.when(i != last)
        def _():
            out_ref[...] = vreg_partials(loss)

        @pl.when(i == last)   # only the last block pays the masking VPU cost
        def _():
            row = i * block_rows + jax.lax.broadcasted_iota(jnp.int32, loss.shape, 0)
            valid = row < n_full_rows
            if rem:
                col = jax.lax.broadcasted_iota(jnp.int32, loss.shape, 1)
                valid = jnp.logical_or(
                    valid, jnp.logical_and(row == n_full_rows, col < rem))
            out_ref[...] = vreg_partials(jnp.where(valid, loss, 0.0))


def _canonical_dtype(a):
    """Keep operands in a TPU-streamable dtype WITHOUT upcasting to f32."""
    if a.dtype == jnp.bool_:
        return a.astype(jnp.int8)
    if jnp.issubdtype(a.dtype, jnp.floating):
        if a.dtype in (jnp.float32, jnp.bfloat16, jnp.float16):
            return a
        return a.astype(jnp.float32)
    if jnp.issubdtype(a.dtype, jnp.integer):
        if a.dtype.itemsize <= 4:
            return a
        return a.astype(jnp.int32)
    return a.astype(jnp.float32)


def _chip_config():
    """(target_pair_bytes_per_block, vmem_limit_bytes) tuned per TPU generation."""
    vmem_cap = None
    try:
        vmem_cap = getattr(pltpu.get_tpu_info(), "vmem_capacity_bytes", None)
    except Exception:
        vmem_cap = None
    if vmem_cap is None:
        try:
            kind = jax.devices()[0].device_kind.lower()
            vmem_cap = (64 << 20) if "v7" in kind else (128 << 20)
        except Exception:
            vmem_cap = 64 << 20
    if vmem_cap >= (100 << 20):      # v4/v5e/v6e: 128 MiB VMEM -> bigger tiles
        return 4 << 20, 64 << 20
    return 2 << 20, 28 << 20         # v7x (64 MiB VMEM) / unknown: conservative


def _default_approx_recip():
    # Exact reciprocal is free on HBM-bound v6e (and safest on unknown chips);
    # keep the cheap EUP approximation where VALU/EUP pressure is higher.
    try:
        kind = jax.devices()[0].device_kind.lower()
    except Exception:
        return False
    return ("v7" in kind) or ("v5" in kind)


def focal_loss(inputs, targets, *, alpha=2.0, gamma=1.5, reduction="mean",
               hard_targets=None, approx_recip=None,
               target_block_bytes=None, vmem_limit_bytes=None):
    """Focal loss matching FocalLoss(alpha, gamma, reduction).forward(inputs, targets)."""
    x = jnp.asarray(inputs)
    t = jnp.asarray(targets)
    assert x.shape == t.shape, (x.shape, t.shape)
    n_valid = int(x.size)
    assert n_valid > 0

    if hard_targets is None:      # integer / bool targets are necessarily hard 0/1
        hard_targets = (t.dtype == jnp.bool_) or jnp.issubdtype(t.dtype, jnp.integer)
    if approx_recip is None:
        approx_recip = _default_approx_recip()

    cfg_blk, cfg_vmem = _chip_config()
    if target_block_bytes is None:
        target_block_bytes = cfg_blk
    if vmem_limit_bytes is None:
        vmem_limit_bytes = cfg_vmem

    x = _canonical_dtype(x).reshape(-1)
    t = _canonical_dtype(t).reshape(-1)

    bc = _LANE
    rows_exact = _cdiv(n_valid, bc)
    if n_valid % bc == 0 and rows_exact >= _ROW_ALIGN:
        rows = rows_exact                 # copy-free lane-dense (rows, 128) view
    else:
        # Truly ragged size: one small zero-pad copy; pad values are irrelevant
        # because the kernel masks by flat index analytically.
        rows = max(_ROW_ALIGN, _round_up(rows_exact, _ROW_ALIGN))
        pad = rows * bc - n_valid
        x = jnp.pad(x, (0, pad))
        t = jnp.pad(t, (0, pad))
    x = x.reshape(rows, bc)
    t = t.reshape(rows, bc)

    # Block-row selection: ~target_block_bytes of (x+t) per grid step, block rows a
    # multiple of 32, and at least two (preferably an even number of) blocks so DMA
    # overlaps compute and both v7x TensorCores get work.
    pair_bytes = bc * (x.dtype.itemsize + t.dtype.itemsize)
    br_target = max(_ROW_ALIGN,
                    (target_block_bytes // pair_bytes) // _ROW_ALIGN * _ROW_ALIGN)
    n_blk = max(1, _cdiv(rows, br_target))
    if rows > _ROW_ALIGN:
        n_blk = max(n_blk, 2)
        if n_blk % 2:
            n_blk += 1
    br = min(_round_up(_cdiv(rows, n_blk), _ROW_ALIGN), _round_up(rows, _ROW_ALIGN))
    n_blocks = _cdiv(rows, br)

    needs_mask = n_blocks * br * bc > n_valid   # boundary-block garbage and/or pad

    kernel = functools.partial(
        _focal_loss_kernel,
        alpha=float(alpha), gamma=float(gamma),
        hard_targets=bool(hard_targets), approx_recip=bool(approx_recip),
        block_rows=br, n_full_rows=n_valid // bc, rem=n_valid % bc,
        needs_mask=bool(needs_mask))

    partials = pl.pallas_call(
        kernel,
        out_shape=jax.ShapeDtypeStruct((n_blocks, 8, bc), jnp.float32),
        grid_spec=pltpu.PrefetchScalarGridSpec(
            num_scalar_prefetch=0,
            grid=(n_blocks,),
            in_specs=[
                pl.BlockSpec((br, bc), lambda i: (i, 0)),
                pl.BlockSpec((br, bc), lambda i: (i, 0)),
            ],
            out_specs=pl.BlockSpec((1, 8, bc), lambda i: (i, 0, 0)),
        ),
        compiler_params=pltpu.CompilerParams(
            dimension_semantics=("parallel",),       # megacore-friendly on v7x
            vmem_limit_bytes=int(vmem_limit_bytes),
        ),
    )(x, t)

    total = jnp.sum(partials, dtype=jnp.float32)     # tiny (n_blocks*1024) combine
    if reduction == "mean":
        return total / jnp.float32(n_valid)
    if reduction == "sum":
        return total
    # TODO(synk): reduction='none' (per-element loss in the original shape) is not
    # implemented in the Pallas path; the module default ('mean') and 'sum' are.
    raise NotImplementedError("reduction='none' is not supported by the Pallas kernel")


def _focal_loss_ref(inputs, targets, alpha=2.0, gamma=1.5):
    """Pure-JAX reference mirroring the PyTorch module (reduction='mean')."""
    x = jnp.asarray(inputs).astype(jnp.float32)
    t = jnp.asarray(targets).astype(jnp.float32)
    bce = jnp.maximum(x, 0.0) - x * t + jnp.log1p(jnp.exp(-jnp.abs(x)))
    p = jax.nn.sigmoid(x)
    p_t = t * p + (1.0 - t) * (1.0 - p)
    loss = alpha * (1.0 - p_t) ** gamma * bce
    return jnp.mean(loss)


if __name__ == "__main__":
    key = jax.random.PRNGKey(0)
    k1, k2 = jax.random.split(key)

    # Binary-classification logits and 0/1 targets (small, module-consistent shape).
    shape = (8, 4, 32, 32)                                    # 32,768 elements
    logits = jax.random.normal(k1, shape, dtype=jnp.float32) * 2.0
    targets = jax.random.bernoulli(k2, p=0.5, shape=shape).astype(jnp.float32)

    ref = jax.block_until_ready(_focal_loss_ref(logits, targets))

    # 1) exact reciprocal, soft-target math (tight tolerance)
    out = jax.block_until_ready(focal_loss(logits, targets, approx_recip=False))
    assert jnp.allclose(out, ref, rtol=1e-4, atol=1e-6), (out, ref)

    # 2) generation-gated defaults (may use EUP approx reciprocal) -> looser tol
    out_fast = jax.block_until_ready(focal_loss(logits, targets))
    assert jnp.allclose(out_fast, ref, rtol=5e-3, atol=1e-5), (out_fast, ref)

    # 3) hard-target fast path (integer targets), under jit
    t_int = targets.astype(jnp.int32)
    f_jit = jax.jit(lambda a, b: focal_loss(a, b, approx_recip=False))
    out_hard = jax.block_until_ready(f_jit(logits, t_int))
    assert jnp.allclose(out_hard, ref, rtol=1e-4, atol=1e-6), (out_hard, ref)

    # 4) bf16 logits + bf16 targets streamed natively (kernel math still f32)
    logits_bf16 = logits.astype(jnp.bfloat16)
    t_bf16 = targets.astype(jnp.bfloat16)
    ref_bf16 = jax.block_until_ready(_focal_loss_ref(logits_bf16, t_bf16))
    out_bf16 = jax.block_until_ready(
        focal_loss(logits_bf16, t_bf16, approx_recip=False))
    assert jnp.allclose(out_bf16, ref_bf16, rtol=1e-4, atol=1e-6), (out_bf16, ref_bf16)

    # 5) ragged shape -> exercises the padded path + in-kernel flat-index mask
    shape2 = (5, 3, 17, 11)                                   # 2,805 elements
    x2 = jax.random.normal(k1, shape2, dtype=jnp.float32)
    t2 = jax.random.bernoulli(k2, p=0.3, shape=shape2).astype(jnp.float32)
    ref2 = jax.block_until_ready(_focal_loss_ref(x2, t2))
    out2 = jax.block_until_ready(focal_loss(x2, t2, approx_recip=False))
    assert jnp.allclose(out2, ref2, rtol=1e-4, atol=1e-6), (out2, ref2)

    # 6) reduction='sum'
    ref_sum = ref * jnp.float32(logits.size)
    out_sum = jax.block_until_ready(
        focal_loss(logits, targets, reduction="sum", approx_recip=False))
    assert jnp.allclose(out_sum, ref_sum, rtol=1e-4, atol=1e-2), (out_sum, ref_sum)

    print("KERNEL_OK")
</pallas_src>

<mosaic_0001>
module attributes {stable_mosaic.version = 11 : i64} {
  func.func @_focal_loss_kernel(%arg0: i32, %arg1: memref<128x128xf32, #tpu.memory_space<vmem>>, %arg2: memref<128x128xf32, #tpu.memory_space<vmem>>, %arg3: memref<1x8x128xf32, #tpu.memory_space<vmem>>) attributes {dimension_semantics = [#tpu.dimension_semantics<parallel>], iteration_bounds = array<i64: 2>, scalar_prefetch = 0 : i64, scratch_operands = 0 : i64, tpu.core_type = #tpu.core_type<tc>, window_params = [{transform_indices = @transform_0, window_bounds = array<i64: 128, 128>}, {transform_indices = @transform_1, window_bounds = array<i64: 128, 128>}, {transform_indices = @transform_2, window_bounds = array<i64: 1, 8, 128>}]} {
    %c0 = arith.constant 0 : index
    %c0_0 = arith.constant 0 : index
    %0 = vector.load %arg1[%c0, %c0_0] : memref<128x128xf32, #tpu.memory_space<vmem>>, vector<128x128xf32>
    %c0_1 = arith.constant 0 : index
    %c0_2 = arith.constant 0 : index
    %1 = vector.load %arg2[%c0_1, %c0_2] : memref<128x128xf32, #tpu.memory_space<vmem>>, vector<128x128xf32>
    %2 = math.absf %0 : vector<128x128xf32>
    %cst = arith.constant 0.000000e+00 : f32
    %3 = vector.broadcast %cst : f32 to vector<128x128xf32>
    %4 = arith.subf %3, %2 : vector<128x128xf32>
    %5 = math.exp %4 : vector<128x128xf32>
    %cst_3 = arith.constant 0.000000e+00 : f32
    %6 = vector.broadcast %cst_3 : f32 to vector<128x128xf32>
    %7 = arith.maximumf %0, %6 : vector<128x128xf32>
    %8 = arith.mulf %0, %1 : vector<128x128xf32>
    %9 = arith.subf %7, %8 : vector<128x128xf32>
    %10 = math.log1p %5 : vector<128x128xf32>
    %11 = arith.addf %9, %10 : vector<128x128xf32>
    %cst_4 = arith.constant 1.000000e+00 : f32
    %12 = vector.broadcast %cst_4 : f32 to vector<128x128xf32>
    %13 = arith.addf %12, %5 : vector<128x128xf32>
    %14 = tpu.reciprocal %13 : vector<128x128xf32> -> vector<128x128xf32>
    %cst_5 = arith.constant 0.000000e+00 : f32
    %15 = vector.broadcast %cst_5 : f32 to vector<128x128xf32>
    %16 = arith.cmpf oge, %0, %15 : vector<128x128xf32>
    %cst_6 = arith.constant 1.000000e+00 : f32
    %17 = vector.broadcast %cst_6 : f32 to vector<128x128xf32>
    %18 = arith.subf %17, %14 : vector<128x128xf32>
    %19 = arith.select %16, %14, %18 : vector<128x128xi1>, vector<128x128xf32>
    %20 = arith.addf %1, %19 : vector<128x128xf32>
    %cst_7 = arith.constant 2.000000e+00 : f32
    %21 = vector.broadcast %cst_7 : f32 to vector<128x128xf32>
    %22 = arith.mulf %21, %1 : vector<128x128xf32>
    %23 = arith.mulf %22, %19 : vector<128x128xf32>
    %24 = arith.subf %20, %23 : vector<128x128xf32>
    %cst_8 = arith.constant 0.000000e+00 : f32
    %25 = vector.broadcast %cst_8 : f32 to vector<128x128xf32>
    %26 = arith.maximumf %24, %25 : vector<128x128xf32>
    %cst_9 = arith.constant 2.000000e+00 : f32
    %27 = vector.broadcast %cst_9 : f32 to vector<128x128xf32>
    %28 = arith.mulf %27, %11 : vector<128x128xf32>
    %29 = math.sqrt %26 : vector<128x128xf32>
    %30 = arith.mulf %26, %29 : vector<128x128xf32>
    %31 = arith.mulf %28, %30 : vector<128x128xf32>
    %32 = vector.shape_cast %31 : vector<128x128xf32> to vector<16x8x128xf32>
    %cst_10 = arith.constant dense<0.000000e+00> : vector<8x128xf32>
    %33 = vector.multi_reduction <add>, %32, %cst_10 [0] : vector<16x8x128xf32> to vector<8x128xf32>
    %34 = vector.shape_cast %33 : vector<8x128xf32> to vector<1x8x128xf32>
    %c0_11 = arith.constant 0 : index
    %c0_12 = arith.constant 0 : index
    %c0_13 = arith.constant 0 : index
    %35 = vector.load %arg3[%c0_11, %c0_12, %c0_13] : memref<1x8x128xf32, #tpu.memory_space<vmem>>, vector<1x8x128xf32>
    tpu.vector_store %arg3[%c0_11, %c0_12, %c0_13], %34 {strides = array<i32>} : memref<1x8x128xf32, #tpu.memory_space<vmem>>, vector<1x8x128xf32>,
    return
  }
  func.func @transform_0(%arg0: i32) -> (i32, i32) {
    %c0_i32 = arith.constant 0 : i32
    %c0_i32_0 = arith.constant 0 : i32
    return %arg0, %c0_i32 : i32, i32
  }
  func.func @transform_1(%arg0: i32) -> (i32, i32) {
    %c0_i32 = arith.constant 0 : i32
    %c0_i32_0 = arith.constant 0 : i32
    return %arg0, %c0_i32 : i32, i32
  }
  func.func @transform_2(%arg0: i32) -> (i32, i32, i32) {
    %c0_i32 = arith.constant 0 : i32
    %c0_i32_0 = arith.constant 0 : i32
    %c0_i32_1 = arith.constant 0 : i32
    return %arg0, %c0_i32, %c0_i32_0 : i32, i32, i32
  }
}

</mosaic_0001>

<llo_original>
// kernel: tpu_custom_call.1
$region0: #{tpu_custom_call.1}
  #allocation0 [shape = 'u32[]', space=smem, size = 0x4, offset = 0x4, fixed_abs, tag = 'smem constant byte address 0x4 - core index']
  #allocation1 [shape = 'u32[144,128]{1,0:T(1,128)}', space=vmem, size = 0x12000, scoped, tag = 'internal scratch']
  %s0 = inlined_call_operand.hbm [shape: f32[256,128], index: 0, kind: input, shape index: {}]
  %s1 = inlined_call_operand.hbm [shape: f32[256,128], index: 1, kind: input, shape index: {}]
  %s2 = inlined_call_operand.hbm [shape: f32[2,8,128], index: 2, kind: output, shape index: {}]
  %s3 = sld [smem:[#allocation0]]
  $region49: #{tpu_custom_call.1} parent=0
    _
  %s5 = ssub.s32 1, %s3
  %s6 = scalar_select 0, %s5, %s3
  $region1: #{tpu_custom_call.1} parent=0
    #allocation2 [shape = 'u8[131072]{0}', space=vmem, size = 0x20000, scoped, tag = 'input window, operand 0']
    #allocation3 [shape = 's32[2]{0}', space=sflag, size = 0x8, scoped, tag = 'scoped memory for tpu_custom_call.1']
    #allocation4 [shape = 's32[2]{0}', space=sflag, size = 0x8, scoped, tag = 'scoped memory for tpu_custom_call.1']
    #allocation5 [shape = 'u8[131072]{0}', space=vmem, size = 0x20000, scoped, tag = 'input window, operand 1']
    #allocation6 [shape = 's32[2]{0}', space=sflag, size = 0x8, scoped, tag = 'scoped memory for tpu_custom_call.1']
    #allocation7 [shape = 'u8[8192]{0}', space=vmem, size = 0x2000, scoped, tag = 'output window, operand 0']
    %7 = vsyncpa [#allocation3], 0
    %s8 = scalar_lea.sflag [#allocation3], 1
    %9 = vsyncpa %s8, 0
    %10 = vsyncpa [#allocation6], 0
    %s11 = scalar_lea.sflag [#allocation6], 1
    %12 = vsyncpa %s11, 0
    %13 = vsyncpa [#allocation4], 0
    %s14 = scalar_lea.sflag [#allocation4], 1
    %15 = vsyncpa %s14, 0
    loop: start=0, step=1, limit=4
    $region2: #{tpu_custom_call.1} parent=1 // loop_pre_header
      _
    $region3: #{tpu_custom_call.1} parent=1 // loop_header
      %s17 = sphi 0, %s21
      %p18 = scmp.ge.s32.totalorder %s17, 4
      %s27 = sphi 0, %s29
      %s30 = sphi 0, %s27
      %s31 = sphi 0, %s30
      %s47 = sphi 0, %s31
      %s53 = sphi 0, %s55
      %s56 = sphi 0, %s53
      %s57 = sphi 0, %s56
      %s73 = sphi 0, %s57
      %s79 = sphi 0, %s81
      %s82 = sphi 0, %s79
      %s83 = sphi 0, %s82
      %s99 = sphi 0, %s83
    $region4: #{tpu_custom_call.1} parent=1 // loop_header_branch
      %20 = sbr.rel (%p18) target = $region8
    $region5: #{tpu_custom_call.1} parent=1 // loop_body
      %s22 = ssub.s32 %s17, 1
      %s23 = ssub.s32 %s17, 2
      %s24 = sadd.s32 %s17, 1
      %s25 = ssub.s32 %s17, %s24
      %p26 = scmp.eq.s32.totalorder %s25, 0
      %s28 = sadd.s32 %s27, 1
      %s29 = scalar_select %p26, %s27, %s28
      %p32 = pneg %p26
      %p33 = scmp.eq.s32.totalorder %s17, 1
      %p34 = por %p32, %p33
      %p35 = scmp.ne.s32.totalorder %s27, %s30
      %p36 = scmp.eq.s32.totalorder %s17, 0
      %p37 = por %p35, %p36
      %p38 = scmp.ne.s32.totalorder %s27, %s30
      %p39 = scmp.eq.s32.totalorder %s22, 1
      %p40 = por %p38, %p39
      %p41 = scmp.ne.s32.totalorder %s30, %s31
      %p42 = scmp.eq.s32.totalorder %s22, 0
      %p43 = por %p41, %p42
      %p44 = scmp.ne.s32.totalorder %s30, %s31
      %p45 = scmp.eq.s32.totalorder %s23, 1
      %p46 = por %p44, %p45
      %p48 = scmp.ne.s32.totalorder %s31, %s47
      %p49 = scmp.eq.s32.totalorder %s23, 0
      %p50 = por %p48, %p49
      %s51 = ssub.s32 %s17, %s24
      %p52 = scmp.eq.s32.totalorder %s51, 0
      %s54 = sadd.s32 %s53, 1
      %s55 = scalar_select %p52, %s53, %s54
      %p58 = pneg %p52
      %p59 = scmp.eq.s32.totalorder %s17, 1
      %p60 = por %p58, %p59
      %p61 = scmp.ne.s32.totalorder %s53, %s56
      %p62 = scmp.eq.s32.totalorder %s17, 0
      %p63 = por %p61, %p62
      %p64 = scmp.ne.s32.totalorder %s53, %s56
      %p65 = scmp.eq.s32.totalorder %s22, 1
      %p66 = por %p64, %p65
      %p67 = scmp.ne.s32.totalorder %s56, %s57
      %p68 = scmp.eq.s32.totalorder %s22, 0
      %p69 = por %p67, %p68
      %p70 = scmp.ne.s32.totalorder %s56, %s57
      %p71 = scmp.eq.s32.totalorder %s23, 1
      %p72 = por %p70, %p71
      %p74 = scmp.ne.s32.totalorder %s57, %s73
      %p75 = scmp.eq.s32.totalorder %s23, 0
      %p76 = por %p74, %p75
      %s77 = ssub.s32 %s17, %s24
      %p78 = scmp.eq.s32.totalorder %s77, 0
      %s80 = sadd.s32 %s79, 1
      %s81 = scalar_select %p78, %s79, %s80
      %p84 = pneg %p78
      %p85 = scmp.eq.s32.totalorder %s17, 1
      %p86 = por %p84, %p85
      %p87 = scmp.ne.s32.totalorder %s79, %s82
      %p88 = scmp.eq.s32.totalorder %s17, 0
      %p89 = por %p87, %p88
      %p90 = scmp.ne.s32.totalorder %s79, %s82
      %p91 = scmp.eq.s32.totalorder %s22, 1
      %p92 = por %p90, %p91
      %p93 = scmp.ne.s32.totalorder %s82, %s83
      %p94 = scmp.eq.s32.totalorder %s22, 0
      %p95 = por %p93, %p94
      %p96 = scmp.ne.s32.totalorder %s82, %s83
      %p97 = scmp.eq.s32.totalorder %s23, 1
      %p98 = por %p96, %p97
      %p100 = scmp.ne.s32.totalorder %s83, %s99
      %p101 = scmp.eq.s32.totalorder %s23, 0
      %p102 = por %p100, %p101
      %p103 = scmp.le.s32.totalorder 1, %s17
      %p104 = scmp.lt.s32.totalorder %s17, 3
      %p105 = pnand %p103, %p104
      %p106 = pneg %p105
      // Predicated region
      $region9: #{tpu_custom_call.1} parent=5 // pred_check
        _
      $region10: #{tpu_custom_call.1} parent=5 // pred_check_branch
        %108 = sbr.rel (%p105) target = $region12
      $region11: #{tpu_custom_call.1} parent=5 // pred_region
        %s109 = ssub.s32 %s17, 1
      $region12: #{tpu_custom_call.1} parent=5 // pred_fallthru
        _
      %p110 = scmp.lt.s32.totalorder %s17, 2
      // Predicated region
      $region13: #{tpu_custom_call.1} parent=5 // pred_check
        %p111 = pneg %p110
      $region14: #{tpu_custom_call.1} parent=5 // pred_check_branch
        %113 = sbr.rel (%p111) target = $region16
      $region15: #{tpu_custom_call.1} parent=5 // pred_region
        // Predicated region
        $region17: #{tpu_custom_call.1} parent=15 // pred_check
          %p114 = pneg %p37
        $region18: #{tpu_custom_call.1} parent=15 // pred_check_branch
          %116 = sbr.rel (%p114) target = $region20
        $region19: #{tpu_custom_call.1} parent=15 // pred_region
          %s117 = sand.u32 %s27, 1
          %s118 = scalar_lea.sflag [#allocation3], %s117
          %s119 = sand.u32 %s27, 1
          %s120 = smul.addr %s119, 128
          %s121 = scalar_lea.vmem [#allocation2], %s120
          %s122 = smul.u32 16, %s17
          %s124 = ssub.s32 2048, 2048
          %125 = vsyncadd %s118, %s124
          %s126 = smul.addr %s122, 128
          %s127 = scalar_lea.hbm %s0, %s126
          %s128 = sshll.u32 %s121, 4
          %s129 = int_to_ptr.vmem [resolvable:$true] %s128
          %134 = dma.hbm_to_vmem [thread:$0]  %s127, 2048, %s129, %s118, 128, 128, 8
        $region20: #{tpu_custom_call.1} parent=15 // pred_fallthru
          _
        // Predicated region
        $region21: #{tpu_custom_call.1} parent=15 // pred_check
          %p135 = pneg %p63
        $region22: #{tpu_custom_call.1} parent=15 // pred_check_branch
          %137 = sbr.rel (%p135) target = $region24
        $region23: #{tpu_custom_call.1} parent=15 // pred_region
          %s138 = sand.u32 %s53, 1
          %s139 = scalar_lea.sflag [#allocation6], %s138
          %s140 = sand.u32 %s53, 1
          %s141 = smul.addr %s140, 128
          %s142 = scalar_lea.vmem [#allocation5], %s141
          %s143 = smul.u32 16, %s17
          %s145 = ssub.s32 2048, 2048
          %146 = vsyncadd %s139, %s145
          %s147 = smul.addr %s143, 128
          %s148 = scalar_lea.hbm %s1, %s147
          %s149 = sshll.u32 %s142, 4
          %s150 = int_to_ptr.vmem [resolvable:$true] %s149
          %155 = dma.hbm_to_vmem [thread:$0]  %s148, 2048, %s150, %s139, 128, 128, 8
        $region24: #{tpu_custom_call.1} parent=15 // pred_fallthru
          _
      $region16: #{tpu_custom_call.1} parent=5 // pred_fallthru
        _
      %p156 = scmp.le.s32.totalorder 1, %s17
      %p157 = scmp.lt.s32.totalorder %s17, 3
      %p158 = pnand %p156, %p157
      %p159 = pneg %p158
      // Predicated region
      $region25: #{tpu_custom_call.1} parent=5 // pred_check
        _
      $region26: #{tpu_custom_call.1} parent=5 // pred_check_branch
        %161 = sbr.rel (%p158) target = $region28
      $region27: #{tpu_custom_call.1} parent=5 // pred_region
        %s162 = ssub.s32 %s17, 1
        %s163 = sand.u32 %s30, 1
        %s164 = scalar_lea.sflag [#allocation3], %s163
        %s165 = sand.u32 %s30, 1
        %s166 = smul.addr %s165, 128
        %s167 = scalar_lea.vmem [#allocation2], %s166
        // Predicated region
        $region29: #{tpu_custom_call.1} parent=27 // pred_check
          %p168 = pneg %p43
        $region30: #{tpu_custom_call.1} parent=27 // pred_check_branch
          %170 = sbr.rel (%p168) target = $region32
        $region31: #{tpu_custom_call.1} parent=27 // pred_region
          %171 = dma.done %s164, 2048
        $region32: #{tpu_custom_call.1} parent=27 // pred_fallthru
          _
        %s172 = sand.u32 %s56, 1
        %s173 = scalar_lea.sflag [#allocation6], %s172
        %s174 = sand.u32 %s56, 1
        %s175 = smul.addr %s174, 128
        %s176 = scalar_lea.vmem [#allocation5], %s175
        // Predicated region
        $region33: #{tpu_custom_call.1} parent=27 // pred_check
          %p177 = pneg %p69
        $region34: #{tpu_custom_call.1} parent=27 // pred_check_branch
          %179 = sbr.rel (%p177) target = $region36
        $region35: #{tpu_custom_call.1} parent=27 // pred_region
          %180 = dma.done %s173, 2048
        $region36: #{tpu_custom_call.1} parent=27 // pred_fallthru
          _
        %s181 = sand.u32 %s30, 1
        %s182 = scalar_lea.sflag [#allocation3], %s181
        %s183 = sand.u32 %s30, 1
        %s184 = smul.addr %s183, 128
        %s185 = scalar_lea.vmem [#allocation2], %s184
        %p186 = pneg %p43
        %p187 = pneg %p40
        %s188 = sand.u32 %s56, 1
        %s189 = scalar_lea.sflag [#allocation6], %s188
        %s190 = sand.u32 %s56, 1
        %s191 = smul.addr %s190, 128
        %s192 = scalar_lea.vmem [#allocation5], %s191
        %p193 = pneg %p69
        %p194 = pneg %p66
        %p195 = pneg %p95
        %p196 = pneg %p92
        %s197 = sand.u32 %s82, 1
        %s198 = scalar_lea.sflag [#allocation4], %s197
        %s199 = sand.u32 %s82, 1
        %s200 = smul.addr %s199, 8
        %s201 = scalar_lea.vmem [#allocation7], %s200
        %s202 = smul.u32 16, %s22
        %s203 = smul.u32 16, %s22
        %v204 = vld [vmem:[%s167] sm:$0xff]
        %v205 = vld [vmem:[%s167 + $0x8] sm:$0xff]
        %v206 = vld [vmem:[%s167 + $0x10] sm:$0xff]
        %v207 = vld [vmem:[%s167 + $0x18] sm:$0xff]
        %v208 = vld [vmem:[%s167 + $0x20] sm:$0xff]
        %v209 = vld [vmem:[%s167 + $0x28] sm:$0xff]
        %v210 = vld [vmem:[%s167 + $0x30] sm:$0xff]
        %v211 = vld [vmem:[%s167 + $0x38] sm:$0xff]
        %v212 = vld [vmem:[%s167 + $0x40] sm:$0xff]
        %v213 = vld [vmem:[%s167 + $0x48] sm:$0xff]
        %v214 = vld [vmem:[%s167 + $0x50] sm:$0xff]
        %v215 = vld [vmem:[%s167 + $0x58] sm:$0xff]
        %v216 = vld [vmem:[%s167 + $0x60] sm:$0xff]
        %v217 = vld [vmem:[%s167 + $0x68] sm:$0xff]
        %v218 = vld [vmem:[%s167 + $0x70] sm:$0xff]
        %v219 = vld [vmem:[%s167 + $0x78] sm:$0xff]
        %v220 = vld [vmem:[%s176] sm:$0xff]
        %v221 = vld [vmem:[%s176 + $0x8] sm:$0xff]
        %v222 = vld [vmem:[%s176 + $0x10] sm:$0xff]
        %v223 = vld [vmem:[%s176 + $0x18] sm:$0xff]
        %v224 = vld [vmem:[%s176 + $0x20] sm:$0xff]
        %v225 = vld [vmem:[%s176 + $0x28] sm:$0xff]
        %v226 = vld [vmem:[%s176 + $0x30] sm:$0xff]
        %v227 = vld [vmem:[%s176 + $0x38] sm:$0xff]
        %v228 = vld [vmem:[%s176 + $0x40] sm:$0xff]
        %v229 = vld [vmem:[%s176 + $0x48] sm:$0xff]
        %v230 = vld [vmem:[%s176 + $0x50] sm:$0xff]
        %v231 = vld [vmem:[%s176 + $0x58] sm:$0xff]
        %v232 = vld [vmem:[%s176 + $0x60] sm:$0xff]
        %v233 = vld [vmem:[%s176 + $0x68] sm:$0xff]
        %v234 = vld [vmem:[%s176 + $0x70] sm:$0xff]
        %v235 = vld [vmem:[%s176 + $0x78] sm:$0xff]
        %v236 = vand.u32 2147483647, %v204
        %v237 = vand.u32 2147483647, %v205
        %v238 = vand.u32 2147483647, %v206
        %v239 = vand.u32 2147483647, %v207
        %v240 = vand.u32 2147483647, %v208
        %v241 = vand.u32 2147483647, %v209
        %v242 = vand.u32 2147483647, %v210
        %v243 = vand.u32 2147483647, %v211
        %v244 = vand.u32 2147483647, %v212
        %v245 = vand.u32 2147483647, %v213
        %v246 = vand.u32 2147483647, %v214
        %v247 = vand.u32 2147483647, %v215
        %v248 = vand.u32 2147483647, %v216
        %v249 = vand.u32 2147483647, %v217
        %v250 = vand.u32 2147483647, %v218
        %v251 = vand.u32 2147483647, %v219
        %v252 = vsub.f32 0.0, %v236
        %v253 = vsub.f32 0.0, %v237
        %v254 = vsub.f32 0.0, %v238
        %v255 = vsub.f32 0.0, %v239
        %v256 = vsub.f32 0.0, %v240
        %v257 = vsub.f32 0.0, %v241
        %v258 = vsub.f32 0.0, %v242
        %v259 = vsub.f32 0.0, %v243
        %v260 = vsub.f32 0.0, %v244
        %v261 = vsub.f32 0.0, %v245
        %v262 = vsub.f32 0.0, %v246
        %v263 = vsub.f32 0.0, %v247
        %v264 = vsub.f32 0.0, %v248
        %v265 = vsub.f32 0.0, %v249
        %v266 = vsub.f32 0.0, %v250
        %v267 = vsub.f32 0.0, %v251
        %v268 = vmul.f32 %v252, 1.442695
        %v269 = vpow.pop %v268
        %v270 = vmul.f32 %v253, 1.442695
        %v271 = vpow.pop %v270
        %v272 = vmul.f32 %v254, 1.442695
        %v273 = vpow.pop %v272
        %v274 = vmul.f32 %v255, 1.442695
        %v275 = vpow.pop %v274
        %v276 = vmul.f32 %v256, 1.442695
        %v277 = vpow.pop %v276
        %v278 = vmul.f32 %v257, 1.442695
        %v279 = vpow.pop %v278
        %v280 = vmul.f32 %v258, 1.442695
        %v281 = vpow.pop %v280
        %v282 = vmul.f32 %v259, 1.442695
        %v283 = vpow.pop %v282
        %v284 = vmul.f32 %v260, 1.442695
        %v285 = vpow.pop %v284
        %v286 = vmul.f32 %v261, 1.442695
        %v287 = vpow.pop %v286
        %v288 = vmul.f32 %v262, 1.442695
        %v289 = vpow.pop %v288
        %v290 = vmul.f32 %v263, 1.442695
        %v291 = vpow.pop %v290
        %v292 = vmul.f32 %v264, 1.442695
        %v293 = vpow.pop %v292
        %v294 = vmul.f32 %v265, 1.442695
        %v295 = vpow.pop %v294
        %v296 = vmul.f32 %v266, 1.442695
        %v297 = vpow.pop %v296
        %v298 = vmul.f32 %v267, 1.442695
        %v299 = vpow.pop %v298
        %v300 = vmax.f32 %v204, 0.0
        %v301 = vmax.f32 %v205, 0.0
        %v302 = vmax.f32 %v206, 0.0
        %v303 = vmax.f32 %v207, 0.0
        %v304 = vmax.f32 %v208, 0.0
        %v305 = vmax.f32 %v209, 0.0
        %v306 = vmax.f32 %v210, 0.0
        %v307 = vmax.f32 %v211, 0.0
        %v308 = vmax.f32 %v212, 0.0
        %v309 = vmax.f32 %v213, 0.0
        %v310 = vmax.f32 %v214, 0.0
        %v311 = vmax.f32 %v215, 0.0
        %v312 = vmax.f32 %v216, 0.0
        %v313 = vmax.f32 %v217, 0.0
        %v314 = vmax.f32 %v218, 0.0
        %v315 = vmax.f32 %v219, 0.0
        %v316 = vmul.f32 %v204, %v220
        %v317 = vmul.f32 %v205, %v221
        %v318 = vmul.f32 %v206, %v222
        %v319 = vmul.f32 %v207, %v223
        %v320 = vmul.f32 %v208, %v224
        %v321 = vmul.f32 %v209, %v225
        %v322 = vmul.f32 %v210, %v226
        %v323 = vmul.f32 %v211, %v227
        %v324 = vmul.f32 %v212, %v228
        %v325 = vmul.f32 %v213, %v229
        %v326 = vmul.f32 %v214, %v230
        %v327 = vmul.f32 %v215, %v231
        %v328 = vmul.f32 %v216, %v232
        %v329 = vmul.f32 %v217, %v233
        %v330 = vmul.f32 %v218, %v234
        %v331 = vmul.f32 %v219, %v235
        %v332 = vsub.f32 %v300, %v316
        %v333 = vsub.f32 %v301, %v317
        %v334 = vsub.f32 %v302, %v318
        %v335 = vsub.f32 %v303, %v319
        %v336 = vsub.f32 %v304, %v320
        %v337 = vsub.f32 %v305, %v321
        %v338 = vsub.f32 %v306, %v322
        %v339 = vsub.f32 %v307, %v323
        %v340 = vsub.f32 %v308, %v324
        %v341 = vsub.f32 %v309, %v325
        %v342 = vsub.f32 %v310, %v326
        %v343 = vsub.f32 %v311, %v327
        %v344 = vsub.f32 %v312, %v328
        %v345 = vsub.f32 %v313, %v329
        %v346 = vsub.f32 %v314, %v330
        %v347 = vsub.f32 %v315, %v331
        %v348 = vadd.f32 %v269, 1.0
        %v349 = vlog2.pop %v348
        %v350 = vmul.f32 %v349, 0.6931472
        %v351 = vmul.f32 -0.5, %v269
        %v352 = vadd.f32 %v351, 1.0
        %v353 = vmul.f32 %v352, %v269
        %v354 = vand.u32 2147483647, %v269
        %vm355 = vcmp.lt.f32.partialorder %v354, 0.0004427343
        %v356 = vsel %vm355, %v353, %v350
        %v357 = vadd.f32 %v271, 1.0
        %v358 = vlog2.pop %v357
        %v359 = vmul.f32 %v358, 0.6931472
        %v360 = vmul.f32 -0.5, %v271
        %v361 = vadd.f32 %v360, 1.0
        %v362 = vmul.f32 %v361, %v271
        %v363 = vand.u32 2147483647, %v271
        %vm364 = vcmp.lt.f32.partialorder %v363, 0.0004427343
        %v365 = vsel %vm364, %v362, %v359
        %v366 = vadd.f32 %v273, 1.0
        %v367 = vlog2.pop %v366
        %v368 = vmul.f32 %v367, 0.6931472
        %v369 = vmul.f32 -0.5, %v273
        %v370 = vadd.f32 %v369, 1.0
        %v371 = vmul.f32 %v370, %v273
        %v372 = vand.u32 2147483647, %v273
        %vm373 = vcmp.lt.f32.partialorder %v372, 0.0004427343
        %v374 = vsel %vm373, %v371, %v368
        %v375 = vadd.f32 %v275, 1.0
        %v376 = vlog2.pop %v375
        %v377 = vmul.f32 %v376, 0.6931472
        %v378 = vmul.f32 -0.5, %v275
        %v379 = vadd.f32 %v378, 1.0
        %v380 = vmul.f32 %v379, %v275
        %v381 = vand.u32 2147483647, %v275
        %vm382 = vcmp.lt.f32.partialorder %v381, 0.0004427343
        %v383 = vsel %vm382, %v380, %v377
        %v384 = vadd.f32 %v277, 1.0
        %v385 = vlog2.pop %v384
        %v386 = vmul.f32 %v385, 0.6931472
        %v387 = vmul.f32 -0.5, %v277
        %v388 = vadd.f32 %v387, 1.0
        %v389 = vmul.f32 %v388, %v277
        %v390 = vand.u32 2147483647, %v277
        %vm391 = vcmp.lt.f32.partialorder %v390, 0.0004427343
        %v392 = vsel %vm391, %v389, %v386
        %v393 = vadd.f32 %v279, 1.0
        %v394 = vlog2.pop %v393
        %v395 = vmul.f32 %v394, 0.6931472
        %v396 = vmul.f32 -0.5, %v279
        %v397 = vadd.f32 %v396, 1.0
        %v398 = vmul.f32 %v397, %v279
        %v399 = vand.u32 2147483647, %v279
        %vm400 = vcmp.lt.f32.partialorder %v399, 0.0004427343
        %v401 = vsel %vm400, %v398, %v395
        %v402 = vadd.f32 %v281, 1.0
        %v403 = vlog2.pop %v402
        %v404 = vmul.f32 %v403, 0.6931472
        %v405 = vmul.f32 -0.5, %v281
        %v406 = vadd.f32 %v405, 1.0
        %v407 = vmul.f32 %v406, %v281
        %v408 = vand.u32 2147483647, %v281
        %vm409 = vcmp.lt.f32.partialorder %v408, 0.0004427343
        %v410 = vsel %vm409, %v407, %v404
        %v411 = vadd.f32 %v283, 1.0
        %v412 = vlog2.pop %v411
        %v413 = vmul.f32 %v412, 0.6931472
        %v414 = vmul.f32 -0.5, %v283
        %v415 = vadd.f32 %v414, 1.0
        %v416 = vmul.f32 %v415, %v283
        %v417 = vand.u32 2147483647, %v283
        %vm418 = vcmp.lt.f32.partialorder %v417, 0.0004427343
        %v419 = vsel %vm418, %v416, %v413
        %v420 = vadd.f32 %v285, 1.0
        %v421 = vlog2.pop %v420
        %v422 = vmul.f32 %v421, 0.6931472
        %v423 = vmul.f32 -0.5, %v285
        %v424 = vadd.f32 %v423, 1.0
        %v425 = vmul.f32 %v424, %v285
        %v426 = vand.u32 2147483647, %v285
        %vm427 = vcmp.lt.f32.partialorder %v426, 0.0004427343
        %v428 = vsel %vm427, %v425, %v422
        %v429 = vadd.f32 %v287, 1.0
        %v430 = vlog2.pop %v429
        %v431 = vmul.f32 %v430, 0.6931472
        %v432 = vmul.f32 -0.5, %v287
        %v433 = vadd.f32 %v432, 1.0
        %v434 = vmul.f32 %v433, %v287
        %v435 = vand.u32 2147483647, %v287
        %vm436 = vcmp.lt.f32.partialorder %v435, 0.0004427343
        %v437 = vsel %vm436, %v434, %v431
        %v438 = vadd.f32 %v289, 1.0
        %v439 = vlog2.pop %v438
        %v440 = vmul.f32 %v439, 0.6931472
        %v441 = vmul.f32 -0.5, %v289
        %v442 = vadd.f32 %v441, 1.0
        %v443 = vmul.f32 %v442, %v289
        %v444 = vand.u32 2147483647, %v289
        %vm445 = vcmp.lt.f32.partialorder %v444, 0.0004427343
        %v446 = vsel %vm445, %v443, %v440
        %v447 = vadd.f32 %v291, 1.0
        %v448 = vlog2.pop %v447
        %v449 = vmul.f32 %v448, 0.6931472
        %v450 = vmul.f32 -0.5, %v291
        %v451 = vadd.f32 %v450, 1.0
        %v452 = vmul.f32 %v451, %v291
        %v453 = vand.u32 2147483647, %v291
        %vm454 = vcmp.lt.f32.partialorder %v453, 0.0004427343
        %v455 = vsel %vm454, %v452, %v449
        %v456 = vadd.f32 %v293, 1.0
        %v457 = vlog2.pop %v456
        %v458 = vmul.f32 %v457, 0.6931472
        %v459 = vmul.f32 -0.5, %v293
        %v460 = vadd.f32 %v459, 1.0
        %v461 = vmul.f32 %v460, %v293
        %v462 = vand.u32 2147483647, %v293
        %vm463 = vcmp.lt.f32.partialorder %v462, 0.0004427343
        %v464 = vsel %vm463, %v461, %v458
        %v465 = vadd.f32 %v295, 1.0
        %v466 = vlog2.pop %v465
        %v467 = vmul.f32 %v466, 0.6931472
        %v468 = vmul.f32 -0.5, %v295
        %v469 = vadd.f32 %v468, 1.0
        %v470 = vmul.f32 %v469, %v295
        %v471 = vand.u32 2147483647, %v295
        %vm472 = vcmp.lt.f32.partialorder %v471, 0.0004427343
        %v473 = vsel %vm472, %v470, %v467
        %v474 = vadd.f32 %v297, 1.0
        %v475 = vlog2.pop %v474
        %v476 = vmul.f32 %v475, 0.6931472
        %v477 = vmul.f32 -0.5, %v297
        %v478 = vadd.f32 %v477, 1.0
        %v479 = vmul.f32 %v478, %v297
        %v480 = vand.u32 2147483647, %v297
        %vm481 = vcmp.lt.f32.partialorder %v480, 0.0004427343
        %v482 = vsel %vm481, %v479, %v476
        %v483 = vadd.f32 %v299, 1.0
        %v484 = vlog2.pop %v483
        %v485 = vmul.f32 %v484, 0.6931472
        %v486 = vmul.f32 -0.5, %v299
        %v487 = vadd.f32 %v486, 1.0
        %v488 = vmul.f32 %v487, %v299
        %v489 = vand.u32 2147483647, %v299
        %vm490 = vcmp.lt.f32.partialorder %v489, 0.0004427343
        %v491 = vsel %vm490, %v488, %v485
        %v492 = vadd.f32 %v332, %v356
        %v493 = vadd.f32 %v333, %v365
        %v494 = vadd.f32 %v334, %v374
        %v495 = vadd.f32 %v335, %v383
        %v496 = vadd.f32 %v336, %v392
        %v497 = vadd.f32 %v337, %v401
        %v498 = vadd.f32 %v338, %v410
        %v499 = vadd.f32 %v339, %v419
        %v500 = vadd.f32 %v340, %v428
        %v501 = vadd.f32 %v341, %v437
        %v502 = vadd.f32 %v342, %v446
        %v503 = vadd.f32 %v343, %v455
        %v504 = vadd.f32 %v344, %v464
        %v505 = vadd.f32 %v345, %v473
        %v506 = vadd.f32 %v346, %v482
        %v507 = vadd.f32 %v347, %v491
        %v508 = vadd.f32 %v269, 1.0
        %v509 = vadd.f32 %v271, 1.0
        %v510 = vadd.f32 %v273, 1.0
        %v511 = vadd.f32 %v275, 1.0
        %v512 = vadd.f32 %v277, 1.0
        %v513 = vadd.f32 %v279, 1.0
        %v514 = vadd.f32 %v281, 1.0
        %v515 = vadd.f32 %v283, 1.0
        %v516 = vadd.f32 %v285, 1.0
        %v517 = vadd.f32 %v287, 1.0
        %v518 = vadd.f32 %v289, 1.0
        %v519 = vadd.f32 %v291, 1.0
        %v520 = vadd.f32 %v293, 1.0
        %v521 = vadd.f32 %v295, 1.0
        %v522 = vadd.f32 %v297, 1.0
        %v523 = vadd.f32 %v299, 1.0
        %v524 = vrcp.pop %v508
        %v525 = vrcp.pop %v509
        %v526 = vrcp.pop %v510
        %v527 = vrcp.pop %v511
        %v528 = vrcp.pop %v512
        %v529 = vrcp.pop %v513
        %v530 = vrcp.pop %v514
        %v531 = vrcp.pop %v515
        %v532 = vrcp.pop %v516
        %v533 = vrcp.pop %v517
        %v534 = vrcp.pop %v518
        %v535 = vrcp.pop %v519
        %v536 = vrcp.pop %v520
        %v537 = vrcp.pop %v521
        %v538 = vrcp.pop %v522
        %v539 = vrcp.pop %v523
        %vm540 = vcmp.ge.f32.partialorder %v204, 0.0
        %vm541 = vcmp.ge.f32.partialorder %v205, 0.0
        %vm542 = vcmp.ge.f32.partialorder %v206, 0.0
        %vm543 = vcmp.ge.f32.partialorder %v207, 0.0
        %vm544 = vcmp.ge.f32.partialorder %v208, 0.0
        %vm545 = vcmp.ge.f32.partialorder %v209, 0.0
        %vm546 = vcmp.ge.f32.partialorder %v210, 0.0
        %vm547 = vcmp.ge.f32.partialorder %v211, 0.0
        %vm548 = vcmp.ge.f32.partialorder %v212, 0.0
        %vm549 = vcmp.ge.f32.partialorder %v213, 0.0
        %vm550 = vcmp.ge.f32.partialorder %v214, 0.0
        %vm551 = vcmp.ge.f32.partialorder %v215, 0.0
        %vm552 = vcmp.ge.f32.partialorder %v216, 0.0
        %vm553 = vcmp.ge.f32.partialorder %v217, 0.0
        %vm554 = vcmp.ge.f32.partialorder %v218, 0.0
        %vm555 = vcmp.ge.f32.partialorder %v219, 0.0
        %v556 = vsub.f32 1.0, %v524
        %v557 = vsub.f32 1.0, %v525
        %v558 = vsub.f32 1.0, %v526
        %v559 = vsub.f32 1.0, %v527
        %v560 = vsub.f32 1.0, %v528
        %v561 = vsub.f32 1.0, %v529
        %v562 = vsub.f32 1.0, %v530
        %v563 = vsub.f32 1.0, %v531
        %v564 = vsub.f32 1.0, %v532
        %v565 = vsub.f32 1.0, %v533
        %v566 = vsub.f32 1.0, %v534
        %v567 = vsub.f32 1.0, %v535
        %v568 = vsub.f32 1.0, %v536
        %v569 = vsub.f32 1.0, %v537
        %v570 = vsub.f32 1.0, %v538
        %v571 = vsub.f32 1.0, %v539
        %v572 = vsel %vm540, %v524, %v556
        %v573 = vsel %vm541, %v525, %v557
        %v574 = vsel %vm542, %v526, %v558
        %v575 = vsel %vm543, %v527, %v559
        %v576 = vsel %vm544, %v528, %v560
        %v577 = vsel %vm545, %v529, %v561
        %v578 = vsel %vm546, %v530, %v562
        %v579 = vsel %vm547, %v531, %v563
        %v580 = vsel %vm548, %v532, %v564
        %v581 = vsel %vm549, %v533, %v565
        %v582 = vsel %vm550, %v534, %v566
        %v583 = vsel %vm551, %v535, %v567
        %v584 = vsel %vm552, %v536, %v568
        %v585 = vsel %vm553, %v537, %v569
        %v586 = vsel %vm554, %v538, %v570
        %v587 = vsel %vm555, %v539, %v571
        %v588 = vadd.f32 %v220, %v572
        %v589 = vadd.f32 %v221, %v573
        %v590 = vadd.f32 %v222, %v574
        %v591 = vadd.f32 %v223, %v575
        %v592 = vadd.f32 %v224, %v576
        %v593 = vadd.f32 %v225, %v577
        %v594 = vadd.f32 %v226, %v578
        %v595 = vadd.f32 %v227, %v579
        %v596 = vadd.f32 %v228, %v580
        %v597 = vadd.f32 %v229, %v581
        %v598 = vadd.f32 %v230, %v582
        %v599 = vadd.f32 %v231, %v583
        %v600 = vadd.f32 %v232, %v584
        %v601 = vadd.f32 %v233, %v585
        %v602 = vadd.f32 %v234, %v586
        %v603 = vadd.f32 %v235, %v587
        %v604 = vmul.f32 %v220, 2.0
        %v605 = vmul.f32 %v221, 2.0
        %v606 = vmul.f32 %v222, 2.0
        %v607 = vmul.f32 %v223, 2.0
        %v608 = vmul.f32 %v224, 2.0
        %v609 = vmul.f32 %v225, 2.0
        %v610 = vmul.f32 %v226, 2.0
        %v611 = vmul.f32 %v227, 2.0
        %v612 = vmul.f32 %v228, 2.0
        %v613 = vmul.f32 %v229, 2.0
        %v614 = vmul.f32 %v230, 2.0
        %v615 = vmul.f32 %v231, 2.0
        %v616 = vmul.f32 %v232, 2.0
        %v617 = vmul.f32 %v233, 2.0
        %v618 = vmul.f32 %v234, 2.0
        %v619 = vmul.f32 %v235, 2.0
        %v620 = vmul.f32 %v604, %v572
        %v621 = vmul.f32 %v605, %v573
        %v622 = vmul.f32 %v606, %v574
        %v623 = vmul.f32 %v607, %v575
        %v624 = vmul.f32 %v608, %v576
        %v625 = vmul.f32 %v609, %v577
        %v626 = vmul.f32 %v610, %v578
        %v627 = vmul.f32 %v611, %v579
        %v628 = vmul.f32 %v612, %v580
        %v629 = vmul.f32 %v613, %v581
        %v630 = vmul.f32 %v614, %v582
        %v631 = vmul.f32 %v615, %v583
        %v632 = vmul.f32 %v616, %v584
        %v633 = vmul.f32 %v617, %v585
        %v634 = vmul.f32 %v618, %v586
        %v635 = vmul.f32 %v619, %v587
        %v636 = vsub.f32 %v588, %v620
        %v637 = vsub.f32 %v589, %v621
        %v638 = vsub.f32 %v590, %v622
        %v639 = vsub.f32 %v591, %v623
        %v640 = vsub.f32 %v592, %v624
        %v641 = vsub.f32 %v593, %v625
        %v642 = vsub.f32 %v594, %v626
        %v643 = vsub.f32 %v595, %v627
        %v644 = vsub.f32 %v596, %v628
        %v645 = vsub.f32 %v597, %v629
        %v646 = vsub.f32 %v598, %v630
        %v647 = vsub.f32 %v599, %v631
        %v648 = vsub.f32 %v600, %v632
        %v649 = vsub.f32 %v601, %v633
        %v650 = vsub.f32 %v602, %v634
        %v651 = vsub.f32 %v603, %v635
        %v652 = vmax.f32 %v636, 0.0
        %v653 = vmax.f32 %v637, 0.0
        %v654 = vmax.f32 %v638, 0.0
        %v655 = vmax.f32 %v639, 0.0
        %v656 = vmax.f32 %v640, 0.0
        %v657 = vmax.f32 %v641, 0.0
        %v658 = vmax.f32 %v642, 0.0
        %v659 = vmax.f32 %v643, 0.0
        %v660 = vmax.f32 %v644, 0.0
        %v661 = vmax.f32 %v645, 0.0
        %v662 = vmax.f32 %v646, 0.0
        %v663 = vmax.f32 %v647, 0.0
        %v664 = vmax.f32 %v648, 0.0
        %v665 = vmax.f32 %v649, 0.0
        %v666 = vmax.f32 %v650, 0.0
        %v667 = vmax.f32 %v651, 0.0
        %v668 = vmul.f32 %v492, 2.0
        %v669 = vmul.f32 %v493, 2.0
        %v670 = vmul.f32 %v494, 2.0
        %v671 = vmul.f32 %v495, 2.0
        %v672 = vmul.f32 %v496, 2.0
        %v673 = vmul.f32 %v497, 2.0
        %v674 = vmul.f32 %v498, 2.0
        %v675 = vmul.f32 %v499, 2.0
        %v676 = vmul.f32 %v500, 2.0
        %v677 = vmul.f32 %v501, 2.0
        %v678 = vmul.f32 %v502, 2.0
        %v679 = vmul.f32 %v503, 2.0
        %v680 = vmul.f32 %v504, 2.0
        %v681 = vmul.f32 %v505, 2.0
        %v682 = vmul.f32 %v506, 2.0
        %v683 = vmul.f32 %v507, 2.0
        %v684 = vrsqrt.pop %v652
        %v685 = vmul.f32 %v652, %v684
        %vm686 = vcmp.eq.f32.partialorder %v652, inf
        %v687 = vsel %vm686, %v652, %v685
        %vm688 = vcmp.eq.f32.partialorder %v652, 0.0
        %v689 = vand.u32 %v652, 2147483648
        %v690 = vsel %vm688, %v689, %v687
        %v691 = vrsqrt.pop %v653
        %v692 = vmul.f32 %v653, %v691
        %vm693 = vcmp.eq.f32.partialorder %v653, inf
        %v694 = vsel %vm693, %v653, %v692
        %vm695 = vcmp.eq.f32.partialorder %v653, 0.0
        %v696 = vand.u32 %v653, 2147483648
        %v697 = vsel %vm695, %v696, %v694
        %v698 = vrsqrt.pop %v654
        %v699 = vmul.f32 %v654, %v698
        %vm700 = vcmp.eq.f32.partialorder %v654, inf
        %v701 = vsel %vm700, %v654, %v699
        %vm702 = vcmp.eq.f32.partialorder %v654, 0.0
        %v703 = vand.u32 %v654, 2147483648
        %v704 = vsel %vm702, %v703, %v701
        %v705 = vrsqrt.pop %v655
        %v706 = vmul.f32 %v655, %v705
        %vm707 = vcmp.eq.f32.partialorder %v655, inf
        %v708 = vsel %vm707, %v655, %v706
        %vm709 = vcmp.eq.f32.partialorder %v655, 0.0
        %v710 = vand.u32 %v655, 2147483648
        %v711 = vsel %vm709, %v710, %v708
        %v712 = vrsqrt.pop %v656
        %v713 = vmul.f32 %v656, %v712
        %vm714 = vcmp.eq.f32.partialorder %v656, inf
        %v715 = vsel %vm714, %v656, %v713
        %vm716 = vcmp.eq.f32.partialorder %v656, 0.0
        %v717 = vand.u32 %v656, 2147483648
        %v718 = vsel %vm716, %v717, %v715
        %v719 = vrsqrt.pop %v657
        %v720 = vmul.f32 %v657, %v719
        %vm721 = vcmp.eq.f32.partialorder %v657, inf
        %v722 = vsel %vm721, %v657, %v720
        %vm723 = vcmp.eq.f32.partialorder %v657, 0.0
        %v724 = vand.u32 %v657, 2147483648
        %v725 = vsel %vm723, %v724, %v722
        %v726 = vrsqrt.pop %v658
        %v727 = vmul.f32 %v658, %v726
        %vm728 = vcmp.eq.f32.partialorder %v658, inf
        %v729 = vsel %vm728, %v658, %v727
        %vm730 = vcmp.eq.f32.partialorder %v658, 0.0
        %v731 = vand.u32 %v658, 2147483648
        %v732 = vsel %vm730, %v731, %v729
        %v733 = vrsqrt.pop %v659
        %v734 = vmul.f32 %v659, %v733
        %vm735 = vcmp.eq.f32.partialorder %v659, inf
        %v736 = vsel %vm735, %v659, %v734
        %vm737 = vcmp.eq.f32.partialorder %v659, 0.0
        %v738 = vand.u32 %v659, 2147483648
        %v739 = vsel %vm737, %v738, %v736
        %v740 = vrsqrt.pop %v660
        %v741 = vmul.f32 %v660, %v740
        %vm742 = vcmp.eq.f32.partialorder %v660, inf
        %v743 = vsel %vm742, %v660, %v741
        %vm744 = vcmp.eq.f32.partialorder %v660, 0.0
        %v745 = vand.u32 %v660, 2147483648
        %v746 = vsel %vm744, %v745, %v743
        %v747 = vrsqrt.pop %v661
        %v748 = vmul.f32 %v661, %v747
        %vm749 = vcmp.eq.f32.partialorder %v661, inf
        %v750 = vsel %vm749, %v661, %v748
        %vm751 = vcmp.eq.f32.partialorder %v661, 0.0
        %v752 = vand.u32 %v661, 2147483648
        %v753 = vsel %vm751, %v752, %v750
        %v754 = vrsqrt.pop %v662
        %v755 = vmul.f32 %v662, %v754
        %vm756 = vcmp.eq.f32.partialorder %v662, inf
        %v757 = vsel %vm756, %v662, %v755
        %vm758 = vcmp.eq.f32.partialorder %v662, 0.0
        %v759 = vand.u32 %v662, 2147483648
        %v760 = vsel %vm758, %v759, %v757
        %v761 = vrsqrt.pop %v663
        %v762 = vmul.f32 %v663, %v761
        %vm763 = vcmp.eq.f32.partialorder %v663, inf
        %v764 = vsel %vm763, %v663, %v762
        %vm765 = vcmp.eq.f32.partialorder %v663, 0.0
        %v766 = vand.u32 %v663, 2147483648
        %v767 = vsel %vm765, %v766, %v764
        %v768 = vrsqrt.pop %v664
        %v769 = vmul.f32 %v664, %v768
        %vm770 = vcmp.eq.f32.partialorder %v664, inf
        %v771 = vsel %vm770, %v664, %v769
        %vm772 = vcmp.eq.f32.partialorder %v664, 0.0
        %v773 = vand.u32 %v664, 2147483648
        %v774 = vsel %vm772, %v773, %v771
        %v775 = vrsqrt.pop %v665
        %v776 = vmul.f32 %v665, %v775
        %vm777 = vcmp.eq.f32.partialorder %v665, inf
        %v778 = vsel %vm777, %v665, %v776
        %vm779 = vcmp.eq.f32.partialorder %v665, 0.0
        %v780 = vand.u32 %v665, 2147483648
        %v781 = vsel %vm779, %v780, %v778
        %v782 = vrsqrt.pop %v666
        %v783 = vmul.f32 %v666, %v782
        %vm784 = vcmp.eq.f32.partialorder %v666, inf
        %v785 = vsel %vm784, %v666, %v783
        %vm786 = vcmp.eq.f32.partialorder %v666, 0.0
        %v787 = vand.u32 %v666, 2147483648
        %v788 = vsel %vm786, %v787, %v785
        %v789 = vrsqrt.pop %v667
        %v790 = vmul.f32 %v667, %v789
        %vm791 = vcmp.eq.f32.partialorder %v667, inf
        %v792 = vsel %vm791, %v667, %v790
        %vm793 = vcmp.eq.f32.partialorder %v667, 0.0
        %v794 = vand.u32 %v667, 2147483648
        %v795 = vsel %vm793, %v794, %v792
        %v796 = vmul.f32 %v652, %v690
        %v797 = vmul.f32 %v653, %v697
        %v798 = vmul.f32 %v654, %v704
        %v799 = vmul.f32 %v655, %v711
        %v800 = vmul.f32 %v656, %v718
        %v801 = vmul.f32 %v657, %v725
        %v802 = vmul.f32 %v658, %v732
        %v803 = vmul.f32 %v659, %v739
        %v804 = vmul.f32 %v660, %v746
        %v805 = vmul.f32 %v661, %v753
        %v806 = vmul.f32 %v662, %v760
        %v807 = vmul.f32 %v663, %v767
        %v808 = vmul.f32 %v664, %v774
        %v809 = vmul.f32 %v665, %v781
        %v810 = vmul.f32 %v666, %v788
        %v811 = vmul.f32 %v667, %v795
        %v812 = vmul.f32 %v668, %v796
        %v813 = vmul.f32 %v669, %v797
        %v814 = vmul.f32 %v670, %v798
        %v815 = vmul.f32 %v671, %v799
        %v816 = vmul.f32 %v672, %v800
        %v817 = vmul.f32 %v673, %v801
        %v818 = vmul.f32 %v674, %v802
        %v819 = vmul.f32 %v675, %v803
        %v820 = vmul.f32 %v676, %v804
        %v821 = vmul.f32 %v677, %v805
        %v822 = vmul.f32 %v678, %v806
        %v823 = vmul.f32 %v679, %v807
        %v824 = vmul.f32 %v680, %v808
        %v825 = vmul.f32 %v681, %v809
        %v826 = vmul.f32 %v682, %v810
        %v827 = vmul.f32 %v683, %v811
        %v828 = vadd.f32 %v812, %v813
        %v829 = vadd.f32 %v828, %v814
        %v830 = vadd.f32 %v829, %v815
        %v831 = vadd.f32 %v830, %v816
        %v832 = vadd.f32 %v831, %v817
        %v833 = vadd.f32 %v832, %v818
        %v834 = vadd.f32 %v833, %v819
        %v835 = vadd.f32 %v834, %v820
        %v836 = vadd.f32 %v835, %v821
        %v837 = vadd.f32 %v836, %v822
        %v838 = vadd.f32 %v837, %v823
        %v839 = vadd.f32 %v838, %v824
        %v840 = vadd.f32 %v839, %v825
        %v841 = vadd.f32 %v840, %v826
        %v842 = vadd.f32 %v841, %v827
        %843 = vst [vmem:[%s201] sm:$0xff] %v842
        %s844 = sand.u32 %s82, 1
        %s845 = scalar_lea.sflag [#allocation4], %s844
        %s846 = sand.u32 %s82, 1
        %s847 = smul.addr %s846, 8
        %s848 = scalar_lea.vmem [#allocation7], %s847
        // Predicated region
        $region37: #{tpu_custom_call.1} parent=27 // pred_check
          %p849 = pneg %p92
        $region38: #{tpu_custom_call.1} parent=27 // pred_check_branch
          %851 = sbr.rel (%p849) target = $region40
        $region39: #{tpu_custom_call.1} parent=27 // pred_region
          %s853 = ssub.s32 128, 128
          %854 = vsyncadd %s845, %s853
          %s855 = smul.addr %s22, 128
          %s856 = scalar_lea.hbm %s2, %s855
          %s858 = sshll.u32 %s848, 4
          %s859 = int_to_ptr.vmem [resolvable:$true] %s858
          %861 = dma.vmem_to_hbm [thread:$0]  %s859, 128, %s856, %s845
        $region40: #{tpu_custom_call.1} parent=27 // pred_fallthru
          _
      $region28: #{tpu_custom_call.1} parent=5 // pred_fallthru
        _
      %p862 = scmp.le.s32.totalorder 2, %s17
      // Predicated region
      $region41: #{tpu_custom_call.1} parent=5 // pred_check
        %p863 = pneg %p862
      $region42: #{tpu_custom_call.1} parent=5 // pred_check_branch
        %865 = sbr.rel (%p863) target = $region44
      $region43: #{tpu_custom_call.1} parent=5 // pred_region
        %s866 = ssub.s32 %s17, 2
        // Predicated region
        $region45: #{tpu_custom_call.1} parent=43 // pred_check
          %p867 = pneg %p98
        $region46: #{tpu_custom_call.1} parent=43 // pred_check_branch
          %869 = sbr.rel (%p867) target = $region48
        $region47: #{tpu_custom_call.1} parent=43 // pred_region
          %s870 = sand.u32 %s83, 1
          %s871 = scalar_lea.sflag [#allocation4], %s870
          %s872 = sand.u32 %s83, 1
          %s873 = smul.addr %s872, 8
          %s874 = scalar_lea.vmem [#allocation7], %s873
          %875 = dma.done %s871, 128
        $region48: #{tpu_custom_call.1} parent=43 // pred_fallthru
          _
      $region44: #{tpu_custom_call.1} parent=5 // pred_fallthru
        _
    $region6: #{tpu_custom_call.1} parent=1 // loop_footer
      %s21 = sadd.s32 1, %s17
    $region7: #{tpu_custom_call.1} parent=1 // loop_footer_branch
      %16 = sbr.rel target = $region3
    $region8: #{tpu_custom_call.1} parent=1 // loop_exit
      _
    %876 = vsyncpa [#allocation3], 1
    %s877 = scalar_lea.sflag [#allocation3], 1
    %878 = vsyncpa %s877, 1
    %879 = vsyncpa [#allocation6], 1
    %s880 = scalar_lea.sflag [#allocation6], 1
    %881 = vsyncpa %s880, 1
    %882 = vsyncpa [#allocation4], 1
    %s883 = scalar_lea.sflag [#allocation4], 1
    %884 = vsyncpa %s883, 1

</llo_original>
